<compile_context>
chip_gen: v6e
topology: v6e:2x2x1
jax: 0.10.0
libtpu: 0.0.40
codegen_flags: <defaults>
</compile_context>

<pallas_src>
import functools

import jax
import jax.numpy as jnp
from jax.experimental import pallas as pl
from jax.experimental.pallas import tpu as pltpu


VMEM_LIMIT_BYTES = 32 * 1024 * 1024


# ----------------------------------------------------------------------------
# Pallas kernels
# ----------------------------------------------------------------------------
def conv_bn_kernel(x_ref, w_ref, mask_ref, z_ref, sum_ref, sq_ref, *, roll_amts):
    """Fused 3x3 conv (9 taps on the MXU) + BatchNorm sum / sum-of-squares.

    x_ref   : (tm, cin)  bf16    flat zero-padded image rows (whole images / block)
    w_ref   : (9, cin, tn) bf16  per-tap weight matrices (t = 3*dy + dx)
    mask_ref: (tm, 1) f32        1.0 at valid output positions, 0.0 at pad/garbage
    z_ref   : (tm, tn)  bf16     conv output in the same padded row layout
    sum_ref : (1, 1, tn) f32     per-(row-block, channel) sum of valid outputs
    sq_ref  : (1, 1, tn) f32     per-(row-block, channel) sum of squares
    """
    x = x_ref[...]
    acc = None
    for t in range(9):
        zt = jnp.dot(x, w_ref[t], preferred_element_type=jnp.float32)
        if roll_amts[t]:
            zt = pltpu.roll(zt, shift=roll_amts[t], axis=0)
        acc = zt if acc is None else acc + zt
    zm = acc * mask_ref[...]
    sum_ref[...] = jnp.sum(zm, axis=0, keepdims=True)[None]
    sq_ref[...] = jnp.sum(zm * zm, axis=0, keepdims=True)[None]
    z_ref[...] = acc.astype(z_ref.dtype)


def affine_relu_pad_kernel(z_ref, scale_ref, shift_ref, mask_ref, o_ref):
    """BN-apply + ReLU; zeros pad/garbage positions so the result IS the next conv's
    zero-padded bf16 input (same flat padded row layout)."""
    z = z_ref[...].astype(jnp.float32)
    y = jnp.maximum(z * scale_ref[...] + shift_ref[...], 0.0) * mask_ref[...]
    o_ref[...] = y.astype(o_ref.dtype)


def affine_relu_crop_kernel(z_ref, scale_ref, shift_ref, o_ref, *, h, w):
    """BN-apply + ReLU on the valid (offset-0) region only -> f32 feature tap."""
    z = z_ref[...][:, :h, :w, :].astype(jnp.float32)
    o_ref[...] = jnp.maximum(z * scale_ref[...] + shift_ref[...], 0.0)


def maxpool_kernel(x_ref, o_ref):
    """2x2/2 max pool; (tr, 2, w2, 2c) blocks keep the last two dims lane-dense and
    turn the W-pair max into a lane-slice maximum."""
    x = x_ref[...]
    m = jnp.maximum(x[:, 0], x[:, 1])                  # pool over the H pair
    c = o_ref.shape[-1]
    o_ref[...] = jnp.maximum(m[..., :c], m[..., c:])   # pool over the W pair


def _roll_probe_kernel(x_ref, o_ref):
    o_ref[...] = pltpu.roll(x_ref[...], shift=1, axis=0)


@functools.lru_cache(maxsize=None)
def _roll_matches_jnp_convention():
    """True iff pltpu.roll(x, s, axis)[i] == x[(i - s) % n] (jnp.roll convention)."""
    x = jnp.arange(8, dtype=jnp.float32)[:, None] * jnp.ones((1, 128), jnp.float32)
    y = pl.pallas_call(
        _roll_probe_kernel,
        out_shape=jax.ShapeDtypeStruct((8, 128), jnp.float32),
    )(x)
    return bool(float(y[0, 0]) == 7.0)


# ----------------------------------------------------------------------------
# Tiling helpers
# ----------------------------------------------------------------------------
def _largest_divisor_leq(n, cap):
    for d in range(min(n, cap), 0, -1):
        if n % d == 0:
            return d
    return 1


def _pick_images_per_block(n, img_rows, bytes_per_img, cap_bytes=8 << 20):
    """Largest divisor of n whose block fits the byte cap; blocks smaller than the
    whole batch must keep the row count a multiple of 8."""
    choice = n
    for nb in range(n, 0, -1):
        if n % nb:
            continue
        if nb != n and (nb * img_rows) % 8 != 0:
            continue
        choice = nb
        if nb * bytes_per_img <= cap_bytes:
            return nb
    return choice


# ----------------------------------------------------------------------------
# Conv3x3(pad=1) + BatchNorm(train-mode statistics)
# ----------------------------------------------------------------------------
def conv_bn(xflat, w9, gamma, beta, n, h, w, off, eps=1e-5):
    """Fused 3x3 conv + BN statistics on the flat padded layout.

    xflat: (n*(h+2)*(w+2), cin) bf16, zero-padded images, row-major.
    off  : 0 -> valid outputs at rows/cols [0, h)/[0, w)   (pre-pool layout)
           1 -> valid outputs at rows/cols [1, h+1)/[1, w+1) (next conv's pad layout)
    Returns z (bf16, same row layout), folded BN scale/shift, the valid mask and the
    block tiling used (reused by the affine+pad kernel).
    """
    cin = xflat.shape[-1]
    cout = w9.shape[-1]
    wp2 = w + 2
    img_rows = (h + 2) * wp2
    m_tot = n * img_rows
    assert xflat.shape[0] == m_tot

    bytes_per_img = img_rows * (2 * cin + 2 * cout + 4)
    nb = _pick_images_per_block(n, img_rows, bytes_per_img)
    tm = nb * img_rows
    num_i = n // nb
    # Whole-image blocks are required for the roll-wrap trick to stay in garbage rows.
    assert tm % img_rows == 0 and (nb == n or tm % 8 == 0)

    tn = cout if cout <= 256 else 256
    num_j = cout // tn

    # Valid-output mask (reused by the affine+ReLU+pad kernel as the interior mask).
    pos = jnp.arange(m_tot, dtype=jnp.int32)
    loc = pos % img_rows
    row = loc // wp2
    col = loc % wp2
    valid = (row >= off) & (row < off + h) & (col >= off) & (col < off + w)
    mask = valid.astype(jnp.float32)[:, None]

    # Tap t = 3*dy + dx contributes to output position p from padded position
    # p + (dy-off)*wp2 + (dx-off); realised with a sublane roll of the tap matmul.
    jnp_conv = _roll_matches_jnp_convention()
    roll_amts = []
    for dy in range(3):
        for dx in range(3):
            s = (dy - off) * wp2 + (dx - off)
            roll_amts.append(int((-s) % tm) if jnp_conv else int(s % tm))

    kernel = functools.partial(conv_bn_kernel, roll_amts=tuple(roll_amts))
    z, ssum, ssq = pl.pallas_call(
        kernel,
        out_shape=(jax.ShapeDtypeStruct((m_tot, cout), jnp.bfloat16),
                   jax.ShapeDtypeStruct((num_i, 1, cout), jnp.float32),
                   jax.ShapeDtypeStruct((num_i, 1, cout), jnp.float32)),
        grid_spec=pltpu.PrefetchScalarGridSpec(
            num_scalar_prefetch=0,
            grid=(num_j, num_i),
            in_specs=[pl.BlockSpec((tm, cin), lambda j, i: (i, 0)),
                      pl.BlockSpec((9, cin, tn), lambda j, i: (0, 0, j)),
                      pl.BlockSpec((tm, 1), lambda j, i: (i, 0))],
            out_specs=[pl.BlockSpec((tm, tn), lambda j, i: (i, j)),
                       pl.BlockSpec((1, 1, tn), lambda j, i: (i, 0, j)),
                       pl.BlockSpec((1, 1, tn), lambda j, i: (i, 0, j))]),
        compiler_params=pltpu.CompilerParams(
            dimension_semantics=("parallel", "parallel"),
            vmem_limit_bytes=VMEM_LIMIT_BYTES),
    )(xflat, w9, mask)

    # Train-mode BatchNorm folding (biased variance, as in torch's forward).
    cnt = jnp.float32(n * h * w)
    mean = jnp.sum(ssum, axis=0).reshape(cout) / cnt
    var = jnp.maximum(jnp.sum(ssq, axis=0).reshape(cout) / cnt - mean * mean, 0.0)
    inv = gamma / jnp.sqrt(var + eps)
    scale = inv
    shift = beta - mean * inv
    return z, scale, shift, mask, tm, num_i


def affine_relu_pad(z, scale, shift, mask, tm, num_i):
    m_tot, c = z.shape
    return pl.pallas_call(
        affine_relu_pad_kernel,
        out_shape=jax.ShapeDtypeStruct((m_tot, c), jnp.bfloat16),
        grid_spec=pltpu.PrefetchScalarGridSpec(
            num_scalar_prefetch=0,
            grid=(num_i,),
            in_specs=[pl.BlockSpec((tm, c), lambda i: (i, 0)),
                      pl.BlockSpec((1, c), lambda i: (0, 0)),
                      pl.BlockSpec((1, c), lambda i: (0, 0)),
                      pl.BlockSpec((tm, 1), lambda i: (i, 0))],
            out_specs=pl.BlockSpec((tm, c), lambda i: (i, 0))),
        compiler_params=pltpu.CompilerParams(
            dimension_semantics=("parallel",),
            vmem_limit_bytes=VMEM_LIMIT_BYTES),
    )(z, scale.reshape(1, c), shift.reshape(1, c), mask)


def affine_relu_crop(z, scale, shift, n, h, w):
    c = z.shape[-1]
    wp2 = w + 2
    z4 = z.reshape(n, h + 2, wp2, c)
    blk_bytes = (h + 2) * wp2 * c * 2 + h * w * c * 4
    nb = _largest_divisor_leq(n, max(1, (8 << 20) // blk_bytes))
    kernel = functools.partial(affine_relu_crop_kernel, h=h, w=w)
    return pl.pallas_call(
        kernel,
        out_shape=jax.ShapeDtypeStruct((n, h, w, c), jnp.float32),
        grid_spec=pltpu.PrefetchScalarGridSpec(
            num_scalar_prefetch=0,
            grid=(n // nb,),
            in_specs=[pl.BlockSpec((nb, h + 2, wp2, c), lambda i: (i, 0, 0, 0)),
                      pl.BlockSpec((1, 1, 1, c), lambda i: (0, 0, 0, 0)),
                      pl.BlockSpec((1, 1, 1, c), lambda i: (0, 0, 0, 0))],
            out_specs=pl.BlockSpec((nb, h, w, c), lambda i: (i, 0, 0, 0))),
        compiler_params=pltpu.CompilerParams(
            dimension_semantics=("parallel",),
            vmem_limit_bytes=VMEM_LIMIT_BYTES),
    )(z4, scale.reshape(1, 1, 1, c), shift.reshape(1, 1, 1, c))


def maxpool2x2(y):
    n, h, w, c = y.shape
    assert h % 2 == 0 and w % 2 == 0
    h2, w2 = h // 2, w // 2
    xr = y.reshape(n * h2, 2, w2, 2 * c)          # metadata-only reshape
    row_bytes = 2 * w2 * 2 * c * 4 + w2 * c * 4
    tr = _largest_divisor_leq(n * h2, max(1, (8 << 20) // row_bytes))
    out = pl.pallas_call(
        maxpool_kernel,
        out_shape=jax.ShapeDtypeStruct((n * h2, w2, c), jnp.float32),
        grid_spec=pltpu.PrefetchScalarGridSpec(
            num_scalar_prefetch=0,
            grid=(n * h2 // tr,),
            in_specs=[pl.BlockSpec((tr, 2, w2, 2 * c), lambda i: (i, 0, 0, 0))],
            out_specs=pl.BlockSpec((tr, w2, c), lambda i: (i, 0, 0))),
        compiler_params=pltpu.CompilerParams(
            dimension_semantics=("parallel",),
            vmem_limit_bytes=VMEM_LIMIT_BYTES),
    )(xr)
    return out.reshape(n, h2, w2, c)


# ----------------------------------------------------------------------------
# CNNEncoder forward (VGG16-bn features; first conv takes class_num+3 channels)
# ----------------------------------------------------------------------------
VGG16_CFG = [64, 64, 'M', 128, 128, 'M', 256, 256, 256, 'M',
             512, 512, 512, 'M', 512, 512, 512, 'M']


def init_params(key, class_num):
    params = []
    cin = class_num + 3
    for item in VGG16_CFG:
        if item == 'M':
            continue
        cout = item
        key, kw = jax.random.split(key)
        w_hwio = (jax.random.normal(kw, (3, 3, cin, cout), jnp.float32)
                  * jnp.sqrt(2.0 / (9 * cin)))
        w9 = w_hwio.reshape(9, cin, cout).astype(jnp.bfloat16)   # tap t = 3*dy + dx
        gamma = jnp.ones((cout,), jnp.float32)                    # BatchNorm defaults
        beta = jnp.zeros((cout,), jnp.float32)
        params.append((w9, gamma, beta))        # conv bias dropped: cancelled by BN
        cin = cout
    return params


def cnn_encoder_forward(x_nchw, params):
    n, _, hh, ww = x_nchw.shape
    x = jnp.transpose(x_nchw, (0, 2, 3, 1)).astype(jnp.bfloat16)   # NCHW -> NHWC
    cur = jnp.pad(x, ((0, 0), (1, 1), (1, 1), (0, 0))).reshape(
        n * (hh + 2) * (ww + 2), -1)
    h, w = hh, ww
    feats, pooled, pi = [], None, 0
    for idx, item in enumerate(VGG16_CFG):
        if item == 'M':
            continue                              # handled via look-ahead below
        w9, gamma, beta = params[pi]
        pi += 1
        pre_pool = VGG16_CFG[idx + 1] == 'M'
        off = 0 if pre_pool else 1
        z, scale, shift, mask, tm, num_i = conv_bn(cur, w9, gamma, beta, n, h, w, off)
        if not pre_pool:
            # Fused BN-apply + ReLU + re-pad: output IS the next conv's input.
            cur = affine_relu_pad(z, scale, shift, mask, tm, num_i)
        else:
            tap = affine_relu_crop(z, scale, shift, n, h, w)   # f32 ReLU output
            feats.append(tap)                                  # ii in {4,11,21,31,41}
            pooled = maxpool2x2(tap)
            h, w = h // 2, w // 2
            # TODO(synk): fold this tiny pad+cast into the pool kernel as well.
            cur = jnp.pad(pooled.astype(jnp.bfloat16),
                          ((0, 0), (1, 1), (1, 1), (0, 0))).reshape(
                n * (h + 2) * (w + 2), -1)
    to_nchw = lambda t: jnp.transpose(t, (0, 3, 1, 2))
    return to_nchw(pooled), [to_nchw(f) for f in feats]


# ----------------------------------------------------------------------------
if __name__ == "__main__":
    class_num = 4
    N, H, W = 2, 32, 32                            # H, W must be multiples of 32
    key = jax.random.PRNGKey(0)
    kx, kp = jax.random.split(key)

    x = jax.random.normal(kx, (N, class_num + 3, H, W), jnp.float32)
    params = init_params(kp, class_num)

    _roll_matches_jnp_convention()                 # resolve roll convention eagerly

    fwd = jax.jit(lambda inp: cnn_encoder_forward(inp, params))
    out, feature_list = fwd(x)
    jax.block_until_ready((out, feature_list))

    assert out.shape == (N, 512, H // 32, W // 32)
    expected = [(64, H), (128, H // 2), (256, H // 4), (512, H // 8), (512, H // 16)]
    for f, (c, s) in zip(feature_list, expected):
        assert f.shape == (N, c, s, s)
    assert bool(jnp.all(jnp.isfinite(out)))

    print("KERNEL_OK")
</pallas_src>

<mosaic_0001>
module attributes {stable_mosaic.version = 11 : i64} {
  func.func @_roll_probe_kernel(%arg0: memref<8x128xf32, #tpu.memory_space<vmem>>, %arg1: memref<8x128xf32, #tpu.memory_space<vmem>>) attributes {dimension_semantics = [], scalar_prefetch = 0 : i64, scratch_operands = 0 : i64, tpu.core_type = #tpu.core_type<tc>} {
    %c0 = arith.constant 0 : index
    %c0_0 = arith.constant 0 : index
    %0 = vector.load %arg0[%c0, %c0_0] : memref<8x128xf32, #tpu.memory_space<vmem>>, vector<8x128xf32>
    %c1_i32 = arith.constant 1 : i32
    %1 = tpu.dynamic_rotate %0 by %c1_i32 dim 0 : vector<8x128xf32>, i32 -> vector<8x128xf32>
    %c0_1 = arith.constant 0 : index
    %c0_2 = arith.constant 0 : index
    %2 = vector.load %arg1[%c0_1, %c0_2] : memref<8x128xf32, #tpu.memory_space<vmem>>, vector<8x128xf32>
    tpu.vector_store %arg1[%c0_1, %c0_2], %1 {strides = array<i32>} : memref<8x128xf32, #tpu.memory_space<vmem>>, vector<8x128xf32>,
    return
  }
}

</mosaic_0001>

<llo_original>
// kernel: tpu_custom_call.1
$region0: #{tpu_custom_call.1}
  #allocation0 [shape = 'u32[]', space=smem, size = 0x4, offset = 0x4, fixed_abs, tag = 'smem constant byte address 0x4 - core index']
  #allocation1 [shape = 'u32[144,128]{1,0:T(1,128)}', space=vmem, size = 0x12000, scoped, tag = 'internal scratch']
  %s0 = inlined_call_operand.hbm [shape: f32[8,128], index: 0, kind: input, shape index: {}]
  %s1 = inlined_call_operand.hbm [shape: f32[8,128], index: 1, kind: output, shape index: {}]
  %s2 = sld [smem:[#allocation0]]
  $region18: #{tpu_custom_call.1} parent=0
    _
  %s4 = ssub.s32 1, %s2
  %s5 = scalar_select 0, %s4, %s2
  $region1: #{tpu_custom_call.1} parent=0
    #allocation2 [shape = 'u8[4096]{0}', space=vmem, size = 0x1000, scoped, tag = 'input window, operand 0, single buffered']
    #allocation3 [shape = 's32[1]{0}', space=sflag, size = 0x4, scoped, tag = 'scoped memory for tpu_custom_call.1']
    #allocation4 [shape = 's32[1]{0}', space=sflag, size = 0x4, scoped, tag = 'scoped memory for tpu_custom_call.1']
    #allocation5 [shape = 'u8[4096]{0}', space=vmem, size = 0x1000, scoped, tag = 'output window, operand 0, single buffered']
    %6 = vsyncpa [#allocation3], 0
    %7 = vsyncpa [#allocation4], 0
    // Predicated region
    $region2: #{tpu_custom_call.1} parent=1 // pred_check
      _
    $region3: #{tpu_custom_call.1} parent=1 // pred_check_branch
      %9 = sbr.rel (0) target = $region5
    $region4: #{tpu_custom_call.1} parent=1 // pred_region
      %s11 = ssub.s32 128, 128
      %12 = vsyncadd [#allocation3], %s11
      %s14 = sshll.u32 [#allocation2], 4
      %s15 = int_to_ptr.vmem [resolvable:$true] %s14
      %17 = dma.hbm_to_vmem [thread:$0]  %s0, 128, %s15, [#allocation3]
    $region5: #{tpu_custom_call.1} parent=1 // pred_fallthru
      _
    // Predicated region
    $region6: #{tpu_custom_call.1} parent=1 // pred_check
      _
    $region7: #{tpu_custom_call.1} parent=1 // pred_check_branch
      %19 = sbr.rel (0) target = $region9
    $region8: #{tpu_custom_call.1} parent=1 // pred_region
      %20 = dma.done [#allocation3], 128
    $region9: #{tpu_custom_call.1} parent=1 // pred_fallthru
      _
    %v21 = vld [vmem:[#allocation2] sm:$0xff]
    %v22 = vrot.slane %v21, 7
    %23 = vst [vmem:[#allocation5] sm:$0xff] %v22
    // Predicated region
    $region10: #{tpu_custom_call.1} parent=1 // pred_check
      _
    $region11: #{tpu_custom_call.1} parent=1 // pred_check_branch
      %25 = sbr.rel (0) target = $region13
    $region12: #{tpu_custom_call.1} parent=1 // pred_region
      %s27 = ssub.s32 128, 128
      %28 = vsyncadd [#allocation4], %s27
      %s30 = sshll.u32 [#allocation5], 4
      %s31 = int_to_ptr.vmem [resolvable:$true] %s30
      %33 = dma.vmem_to_hbm [thread:$0]  %s31, 128, %s1, [#allocation4]
    $region13: #{tpu_custom_call.1} parent=1 // pred_fallthru
      _
    // Predicated region
    $region14: #{tpu_custom_call.1} parent=1 // pred_check
      _
    $region15: #{tpu_custom_call.1} parent=1 // pred_check_branch
      %35 = sbr.rel (0) target = $region17
    $region16: #{tpu_custom_call.1} parent=1 // pred_region
      %36 = dma.done [#allocation4], 128
    $region17: #{tpu_custom_call.1} parent=1 // pred_fallthru
      _
    %37 = vsyncpa [#allocation3], 1
    %38 = vsyncpa [#allocation4], 1

</llo_original>
